<compile_context>
chip_gen: v7x
topology: tpu7x:2x2x1
jax: 0.10.0
libtpu: 0.0.40
codegen_flags: <defaults>
</compile_context>

<pallas_src>
import jax
import jax.numpy as jnp
from jax import lax
from jax.experimental import pallas as pl
from jax.experimental.pallas import tpu as pltpu

_LANES = 128
_ACC_ROWS = 32                          # accumulator sublane rows (4 f32 vreg slabs)
_TARGET_TILE_BYTES = 4 * 1024 * 1024    # ~4 MiB streamed tile (safe on all gens)
_PALLAS_MIN_BYTES = 1 << 20             # below this, plain jnp (launch overhead wins)


def _round_up(x, m):
    return ((x + m - 1) // m) * m


def _make_sumsq_kernel(rows, block_rows, needs_mask):
    """Kernel computing sum(x.astype(f32)**2) over a (rows, 128) array."""

    def kernel(x_ref, o_ref, acc_ref):
        i = pl.program_id(0)
        last = pl.num_programs(0) - 1

        @pl.when(i == 0)
        def _init():
            acc_ref[...] = jnp.zeros_like(acc_ref)

        x = x_ref[...].astype(jnp.float32)      # widen in-register (free under DMA)
        xsq = x * x

        def _accumulate(vals):
            # vreg-shaped accumulation: elementwise adds of (32,128) slabs
            # (pure VALU); the cross-lane/sublane reduce runs once at the end.
            acc_ref[...] += vals.reshape(
                block_rows // _ACC_ROWS, _ACC_ROWS, _LANES).sum(axis=0)

        if needs_mask:
            # Only the final block is partial; gate the mask so every other
            # grid step runs the minimal mul+add path.
            @pl.when(i != last)
            def _full_block():
                _accumulate(xsq)

            @pl.when(i == last)
            def _ragged_block():
                # Rows past `rows` in the boundary block hold unspecified data;
                # jnp.where is a select, so NaN/inf there cannot leak through.
                row_ids = (i * block_rows
                           + lax.broadcasted_iota(jnp.int32, (block_rows, 1), 0))
                valid = row_ids < rows           # (block_rows, 1) bcast over lanes
                _accumulate(jnp.where(valid, xsq, 0.0))
        else:
            _accumulate(xsq)

        @pl.when(i == last)
        def _finalize():
            o_ref[...] = jnp.sum(acc_ref[...]).reshape(1, 1)

    return kernel


def _sum_squares_2d(x2d):
    """0-d f32 sum of squares of a (rows, 128) array via a Pallas reduction."""
    rows = x2d.shape[0]
    itemsize = x2d.dtype.itemsize

    # Tile size derived from a byte target, scaled by dtype; aligned to the
    # accumulator slab height (32 rows, also satisfies bf16/int8 packing).
    target_rows = max(_ACC_ROWS, _TARGET_TILE_BYTES // (_LANES * itemsize))
    block_rows = min(_round_up(target_rows, _ACC_ROWS),
                     _round_up(rows, _ACC_ROWS))
    grid = (pl.cdiv(rows, block_rows),)
    needs_mask = (rows % block_rows) != 0

    tile_bytes = block_rows * _LANES * itemsize
    # double-buffered input tile + accumulator/output + compiler headroom
    vmem_limit = int(2 * tile_bytes + (2 << 20))

    n = rows * _LANES
    kernel = _make_sumsq_kernel(rows, block_rows, needs_mask)

    out = pl.pallas_call(
        kernel,
        out_shape=jax.ShapeDtypeStruct((1, 1), jnp.float32),
        grid_spec=pltpu.PrefetchScalarGridSpec(
            num_scalar_prefetch=0,
            grid=grid,
            in_specs=[pl.BlockSpec((block_rows, _LANES), lambda i: (i, 0))],
            out_specs=pl.BlockSpec((1, 1), lambda i: (0, 0)),
            scratch_shapes=[pltpu.VMEM((_ACC_ROWS, _LANES), jnp.float32)],
        ),
        compiler_params=pltpu.CompilerParams(
            dimension_semantics=("arbitrary",),     # reduction axis
            vmem_limit_bytes=vmem_limit),
        cost_estimate=pl.CostEstimate(
            flops=2 * n, transcendentals=0,
            bytes_accessed=n * itemsize + 4),
    )(x2d)
    return out[0, 0]


def _sum_squares(x):
    """0-d float32: sum(x.astype(f32)**2) over all elements of x."""
    n = x.size
    if n == 0:
        return jnp.zeros((), jnp.float32)

    if n * x.dtype.itemsize < _PALLAS_MIN_BYTES:
        # Tiny embedding: a pallas_call's dispatch + pipeline ramp/drain costs
        # more than the whole reduction; let XLA fuse it.
        xf = x.astype(jnp.float32)
        return jnp.sum(xf * xf)

    flat = x.reshape(-1)                 # row-major flatten: layout-preserving
    total = jnp.zeros((), jnp.float32)

    tail = n % _LANES
    if tail:
        # <128-element tail: trivial jnp reduction instead of padding the
        # whole array in HBM.
        # TODO(synk): XLA may still materialize the prefix slice below; a 1-D
        # ragged kernel (element-index mask) would avoid that copy entirely.
        t = flat[n - tail:].astype(jnp.float32)
        total = total + jnp.sum(t * t)
        flat = flat[:n - tail]

    rows = (n - tail) // _LANES
    x2d = flat.reshape(rows, _LANES)     # free reshape, no copy
    return total + _sum_squares_2d(x2d)


def emb_loss(*embeddings, norm=2):
    """Pallas equivalent of EmbLoss.forward(*embeddings) -> shape (1,) f32."""
    if norm != 2:
        # TODO(synk): only p=2 (the module default) is implemented in-kernel.
        raise NotImplementedError("emb_loss: only norm=2 is supported")
    total = jnp.zeros((), jnp.float32)
    for e in embeddings:
        total = total + jnp.sqrt(_sum_squares(e))
    total = total / embeddings[-1].shape[0]
    return total.reshape(1)


if __name__ == "__main__":
    key = jax.random.PRNGKey(0)
    k1, k2, k3, k4, k5 = jax.random.split(key, 5)

    # Deterministic embeddings exercising every path:
    #  e1: Pallas, 128-divisible, single exact block (no mask)
    #  e2: Pallas bf16, ragged rows + <128-element tail handled in jnp
    #  e3: Pallas f32, multi-block grid with gated ragged last block
    #  e4/e5: tiny embeddings -> plain-jnp fallback path
    e1 = jax.random.normal(k1, (2048, 160), dtype=jnp.float32)    # 1.25 MiB
    e2 = jax.random.normal(k2, (8191, 96), dtype=jnp.bfloat16)    # ~1.5 MiB
    e3 = jax.random.normal(k3, (9000, 128), dtype=jnp.float32)    # ~4.4 MiB
    e4 = jax.random.normal(k4, (8, 32), dtype=jnp.float32)
    e5 = jax.random.normal(k5, (2, 8, 32), dtype=jnp.bfloat16)

    embs = (e1, e2, e3, e4, e5)
    out = jax.block_until_ready(emb_loss(*embs))

    # Pure-JAX reference with the PyTorch EmbLoss semantics.
    ref = jnp.zeros((), jnp.float32)
    for e in embs:
        ef = e.astype(jnp.float32)
        ref = ref + jnp.sqrt(jnp.sum(ef * ef))
    ref = (ref / embs[-1].shape[0]).reshape(1)

    assert out.shape == (1,), out.shape
    assert jnp.allclose(out, ref, rtol=1e-5, atol=1e-5), (out, ref)

    print("KERNEL_OK")
</pallas_src>

<mosaic_0001>
module attributes {stable_mosaic.version = 11 : i64} {
  func.func @kernel(%arg0: i32, %arg1: memref<2560x128xf32, #tpu.memory_space<vmem>>, %arg2: memref<1x1xf32, #tpu.memory_space<vmem>>, %arg3: memref<32x128xf32, #tpu.memory_space<vmem>>) attributes {dimension_semantics = [#tpu.dimension_semantics<arbitrary>], iteration_bounds = array<i64: 1>, scalar_prefetch = 0 : i64, scratch_operands = 1 : i64, tpu.core_type = #tpu.core_type<tc>, window_params = [{transform_indices = @transform_0, window_bounds = array<i64: 2560, 128>}, {pipeline_mode = #tpu.pipeline_mode<synchronous>, transform_indices = @transform_1, window_bounds = array<i64: 1, 1>}]} {
    %c0_i32 = arith.constant 0 : i32
    %0 = arith.cmpi eq, %arg0, %c0_i32 : i32
    %1 = arith.extui %0 : i1 to i32
    %c0_i32_0 = arith.constant 0 : i32
    %2 = arith.cmpi ne, %1, %c0_i32_0 : i32
    scf.if %2 {
      %cst_8 = arith.constant 0.000000e+00 : f32
      %13 = vector.broadcast %cst_8 : f32 to vector<32x128xf32>
      %c0_9 = arith.constant 0 : index
      %c0_10 = arith.constant 0 : index
      %14 = vector.load %arg3[%c0_9, %c0_10] : memref<32x128xf32, #tpu.memory_space<vmem>>, vector<32x128xf32>
      tpu.vector_store %arg3[%c0_9, %c0_10], %13 {strides = array<i32>} : memref<32x128xf32, #tpu.memory_space<vmem>>, vector<32x128xf32>,
    } else {
    }
    %c0 = arith.constant 0 : index
    %c0_1 = arith.constant 0 : index
    %3 = vector.load %arg1[%c0, %c0_1] : memref<2560x128xf32, #tpu.memory_space<vmem>>, vector<2560x128xf32>
    %4 = arith.mulf %3, %3 : vector<2560x128xf32>
    %c0_2 = arith.constant 0 : index
    %c0_3 = arith.constant 0 : index
    %5 = vector.load %arg3[%c0_2, %c0_3] : memref<32x128xf32, #tpu.memory_space<vmem>>, vector<32x128xf32>
    %6 = vector.shape_cast %4 : vector<2560x128xf32> to vector<80x32x128xf32>
    %cst = arith.constant dense<0.000000e+00> : vector<32x128xf32>
    %7 = vector.multi_reduction <add>, %6, %cst [0] : vector<80x32x128xf32> to vector<32x128xf32>
    %8 = arith.addf %5, %7 : vector<32x128xf32>
    %c0_4 = arith.constant 0 : index
    %c0_5 = arith.constant 0 : index
    %9 = vector.load %arg3[%c0_4, %c0_5] : memref<32x128xf32, #tpu.memory_space<vmem>>, vector<32x128xf32>
    tpu.vector_store %arg3[%c0_4, %c0_5], %8 {strides = array<i32>} : memref<32x128xf32, #tpu.memory_space<vmem>>, vector<32x128xf32>,
    %c0_i32_6 = arith.constant 0 : i32
    %10 = arith.cmpi eq, %arg0, %c0_i32_6 : i32
    %11 = arith.extui %10 : i1 to i32
    %c0_i32_7 = arith.constant 0 : i32
    %12 = arith.cmpi ne, %11, %c0_i32_7 : i32
    scf.if %12 {
      %c0_8 = arith.constant 0 : index
      %c0_9 = arith.constant 0 : index
      %13 = vector.load %arg3[%c0_8, %c0_9] : memref<32x128xf32, #tpu.memory_space<vmem>>, vector<32x128xf32>
      %14 = vector.shape_cast %13 : vector<32x128xf32> to vector<1x32x128xf32>
      %cst_10 = arith.constant dense<0.000000e+00> : vector<1xf32>
      %15 = vector.multi_reduction <add>, %14, %cst_10 [1, 2] : vector<1x32x128xf32> to vector<1xf32>
      %16 = vector.shape_cast %15 : vector<1xf32> to vector<1x1x1xf32>
      %17 = vector.extract %16[0, 0, 0] : f32 from vector<1x1x1xf32>
      %18 = vector.broadcast %17 : f32 to vector<1x1xf32>
      %c0_11 = arith.constant 0 : index
      %c0_12 = arith.constant 0 : index
      %19 = vector.load %arg2[%c0_11, %c0_12] : memref<1x1xf32, #tpu.memory_space<vmem>>, vector<1x1xf32>
      tpu.vector_store %arg2[%c0_11, %c0_12], %18 {strides = array<i32>} : memref<1x1xf32, #tpu.memory_space<vmem>>, vector<1x1xf32>,
    } else {
    }
    return
  }
  func.func @transform_0(%arg0: i32) -> (i32, i32) {
    %c0_i32 = arith.constant 0 : i32
    %c0_i32_0 = arith.constant 0 : i32
    return %arg0, %c0_i32 : i32, i32
  }
  func.func @transform_1(%arg0: i32) -> (i32, i32) {
    %c0_i32 = arith.constant 0 : i32
    %c0_i32_0 = arith.constant 0 : i32
    %c0_i32_1 = arith.constant 0 : i32
    return %c0_i32, %c0_i32_0 : i32, i32
  }
}

</mosaic_0001>

<llo_original>
// kernel: tpu_custom_call.1
$region0: #{tpu_custom_call.1}
  #allocation0 [shape = 'u32[]', space=smem, size = 0x4, offset = 0x4, fixed_abs, tag = 'smem constant byte address 0x4 - core index']
  #allocation1 [shape = 'u32[144,128]{1,0:T(1,128)}', space=vmem, size = 0x12000, scoped, tag = 'internal scratch']
  #allocation2 [shape = 'f32[32,128]{1,0:T(8,128)}', space=vmem, size = 0x4000, scoped, tag = 'scratch operand']
  %s0 = inlined_call_operand.hbm [shape: f32[2560,128], index: 0, kind: input, shape index: {}]
  %s1 = inlined_call_operand.hbm [shape: f32[1,1], index: 1, kind: output, shape index: {}]
  %s2 = sld [smem:[#allocation0]]
  $region26: #{tpu_custom_call.1} parent=0
    _
  %s4 = ssub.s32 1, %s2
  %s5 = scalar_select 0, %s4, %s2
  $region1: #{tpu_custom_call.1} parent=0
    #allocation3 [shape = 'u8[1310720]{0}', space=vmem, size = 0x140000, scoped, tag = 'input window, operand 0, single buffered']
    #allocation4 [shape = 's32[1]{0}', space=sflag, size = 0x4, scoped, tag = 'scoped memory for tpu_custom_call.1']
    #allocation5 [shape = 's32[1]{0}', space=sflag, size = 0x4, scoped, tag = 'scoped memory for tpu_custom_call.1']
    #allocation6 [shape = 'u8[512]{0}', space=vmem, size = 0x400, scoped, tag = 'output window, operand 0, single buffered']
    %6 = vsyncpa [#allocation4], 0
    %7 = vsyncpa [#allocation5], 0
    // Predicated region
    $region2: #{tpu_custom_call.1} parent=1 // pred_check
      _
    $region3: #{tpu_custom_call.1} parent=1 // pred_check_branch
      %9 = sbr.rel (0) target = $region5
    $region4: #{tpu_custom_call.1} parent=1 // pred_region
      %s11 = ssub.s32 40960, 40960
      %12 = vsyncadd [#allocation4], %s11
      %s13 = sshll.u32 [#allocation3], 4
      %s14 = int_to_ptr.vmem [resolvable:$true] %s13
      %19 = dma.hbm_to_vmem [thread:$0]  %s0, 40960, %s14, [#allocation4], 128, 128, 8
    $region5: #{tpu_custom_call.1} parent=1 // pred_fallthru
      _
    // Predicated region
    $region6: #{tpu_custom_call.1} parent=1 // pred_check
      _
    $region7: #{tpu_custom_call.1} parent=1 // pred_check_branch
      %21 = sbr.rel (0) target = $region9
    $region8: #{tpu_custom_call.1} parent=1 // pred_region
      %22 = dma.done [#allocation4], 40960
    $region9: #{tpu_custom_call.1} parent=1 // pred_fallthru
      _
    %p23 = scmp.eq.s32.totalorder 0, 0
    // Predicated region
    $region10: #{tpu_custom_call.1} parent=1 // pred_check
      %p24 = pneg %p23
    $region11: #{tpu_custom_call.1} parent=1 // pred_check_branch
      %26 = sbr.rel (%p24) target = $region13
    $region12: #{tpu_custom_call.1} parent=1 // pred_region
      %27 = vst [vmem:[#allocation2] sm:$0xff] 0.0
      %28 = vst [vmem:[#allocation2 + $0x8] sm:$0xff] 0.0
      %29 = vst [vmem:[#allocation2 + $0x10] sm:$0xff] 0.0
      %30 = vst [vmem:[#allocation2 + $0x18] sm:$0xff] 0.0
    $region13: #{tpu_custom_call.1} parent=1 // pred_fallthru
      _
    %v31 = vld [vmem:[#allocation3] sm:$0xff]
    %v32 = vld [vmem:[#allocation3 + $0x8] sm:$0xff]
    %v33 = vld [vmem:[#allocation3 + $0x10] sm:$0xff]
    %v34 = vld [vmem:[#allocation3 + $0x18] sm:$0xff]
    %v35 = vld [vmem:[#allocation3 + $0x20] sm:$0xff]
    %v36 = vld [vmem:[#allocation3 + $0x28] sm:$0xff]
    %v37 = vld [vmem:[#allocation3 + $0x30] sm:$0xff]
    %v38 = vld [vmem:[#allocation3 + $0x38] sm:$0xff]
    %v39 = vld [vmem:[#allocation3 + $0x40] sm:$0xff]
    %v40 = vld [vmem:[#allocation3 + $0x48] sm:$0xff]
    %v41 = vld [vmem:[#allocation3 + $0x50] sm:$0xff]
    %v42 = vld [vmem:[#allocation3 + $0x58] sm:$0xff]
    %v43 = vld [vmem:[#allocation3 + $0x60] sm:$0xff]
    %v44 = vld [vmem:[#allocation3 + $0x68] sm:$0xff]
    %v45 = vld [vmem:[#allocation3 + $0x70] sm:$0xff]
    %v46 = vld [vmem:[#allocation3 + $0x78] sm:$0xff]
    %v47 = vld [vmem:[#allocation3 + $0x80] sm:$0xff]
    %v48 = vld [vmem:[#allocation3 + $0x88] sm:$0xff]
    %v49 = vld [vmem:[#allocation3 + $0x90] sm:$0xff]
    %v50 = vld [vmem:[#allocation3 + $0x98] sm:$0xff]
    %v51 = vld [vmem:[#allocation3 + $0xa0] sm:$0xff]
    %v52 = vld [vmem:[#allocation3 + $0xa8] sm:$0xff]
    %v53 = vld [vmem:[#allocation3 + $0xb0] sm:$0xff]
    %v54 = vld [vmem:[#allocation3 + $0xb8] sm:$0xff]
    %v55 = vld [vmem:[#allocation3 + $0xc0] sm:$0xff]
    %v56 = vld [vmem:[#allocation3 + $0xc8] sm:$0xff]
    %v57 = vld [vmem:[#allocation3 + $0xd0] sm:$0xff]
    %v58 = vld [vmem:[#allocation3 + $0xd8] sm:$0xff]
    %v59 = vld [vmem:[#allocation3 + $0xe0] sm:$0xff]
    %v60 = vld [vmem:[#allocation3 + $0xe8] sm:$0xff]
    %v61 = vld [vmem:[#allocation3 + $0xf0] sm:$0xff]
    %v62 = vld [vmem:[#allocation3 + $0xf8] sm:$0xff]
    %v63 = vld [vmem:[#allocation3 + $0x100] sm:$0xff]
    %v64 = vld [vmem:[#allocation3 + $0x108] sm:$0xff]
    %v65 = vld [vmem:[#allocation3 + $0x110] sm:$0xff]
    %v66 = vld [vmem:[#allocation3 + $0x118] sm:$0xff]
    %v67 = vld [vmem:[#allocation3 + $0x120] sm:$0xff]
    %v68 = vld [vmem:[#allocation3 + $0x128] sm:$0xff]
    %v69 = vld [vmem:[#allocation3 + $0x130] sm:$0xff]
    %v70 = vld [vmem:[#allocation3 + $0x138] sm:$0xff]
    %v71 = vld [vmem:[#allocation3 + $0x140] sm:$0xff]
    %v72 = vld [vmem:[#allocation3 + $0x148] sm:$0xff]
    %v73 = vld [vmem:[#allocation3 + $0x150] sm:$0xff]
    %v74 = vld [vmem:[#allocation3 + $0x158] sm:$0xff]
    %v75 = vld [vmem:[#allocation3 + $0x160] sm:$0xff]
    %v76 = vld [vmem:[#allocation3 + $0x168] sm:$0xff]
    %v77 = vld [vmem:[#allocation3 + $0x170] sm:$0xff]
    %v78 = vld [vmem:[#allocation3 + $0x178] sm:$0xff]
    %v79 = vld [vmem:[#allocation3 + $0x180] sm:$0xff]
    %v80 = vld [vmem:[#allocation3 + $0x188] sm:$0xff]
    %v81 = vld [vmem:[#allocation3 + $0x190] sm:$0xff]
    %v82 = vld [vmem:[#allocation3 + $0x198] sm:$0xff]
    %v83 = vld [vmem:[#allocation3 + $0x1a0] sm:$0xff]
    %v84 = vld [vmem:[#allocation3 + $0x1a8] sm:$0xff]
    %v85 = vld [vmem:[#allocation3 + $0x1b0] sm:$0xff]
    %v86 = vld [vmem:[#allocation3 + $0x1b8] sm:$0xff]
    %v87 = vld [vmem:[#allocation3 + $0x1c0] sm:$0xff]
    %v88 = vld [vmem:[#allocation3 + $0x1c8] sm:$0xff]
    %v89 = vld [vmem:[#allocation3 + $0x1d0] sm:$0xff]
    %v90 = vld [vmem:[#allocation3 + $0x1d8] sm:$0xff]
    %v91 = vld [vmem:[#allocation3 + $0x1e0] sm:$0xff]
    %v92 = vld [vmem:[#allocation3 + $0x1e8] sm:$0xff]
    %v93 = vld [vmem:[#allocation3 + $0x1f0] sm:$0xff]
    %v94 = vld [vmem:[#allocation3 + $0x1f8] sm:$0xff]
    %v95 = vld [vmem:[#allocation3 + $0x200] sm:$0xff]
    %v96 = vld [vmem:[#allocation3 + $0x208] sm:$0xff]
    %v97 = vld [vmem:[#allocation3 + $0x210] sm:$0xff]
    %v98 = vld [vmem:[#allocation3 + $0x218] sm:$0xff]
    %v99 = vld [vmem:[#allocation3 + $0x220] sm:$0xff]
    %v100 = vld [vmem:[#allocation3 + $0x228] sm:$0xff]
    %v101 = vld [vmem:[#allocation3 + $0x230] sm:$0xff]
    %v102 = vld [vmem:[#allocation3 + $0x238] sm:$0xff]
    %v103 = vld [vmem:[#allocation3 + $0x240] sm:$0xff]
    %v104 = vld [vmem:[#allocation3 + $0x248] sm:$0xff]
    %v105 = vld [vmem:[#allocation3 + $0x250] sm:$0xff]
    %v106 = vld [vmem:[#allocation3 + $0x258] sm:$0xff]
    %v107 = vld [vmem:[#allocation3 + $0x260] sm:$0xff]
    %v108 = vld [vmem:[#allocation3 + $0x268] sm:$0xff]
    %v109 = vld [vmem:[#allocation3 + $0x270] sm:$0xff]
    %v110 = vld [vmem:[#allocation3 + $0x278] sm:$0xff]
    %v111 = vld [vmem:[#allocation3 + $0x280] sm:$0xff]
    %v112 = vld [vmem:[#allocation3 + $0x288] sm:$0xff]
    %v113 = vld [vmem:[#allocation3 + $0x290] sm:$0xff]
    %v114 = vld [vmem:[#allocation3 + $0x298] sm:$0xff]
    %v115 = vld [vmem:[#allocation3 + $0x2a0] sm:$0xff]
    %v116 = vld [vmem:[#allocation3 + $0x2a8] sm:$0xff]
    %v117 = vld [vmem:[#allocation3 + $0x2b0] sm:$0xff]
    %v118 = vld [vmem:[#allocation3 + $0x2b8] sm:$0xff]
    %v119 = vld [vmem:[#allocation3 + $0x2c0] sm:$0xff]
    %v120 = vld [vmem:[#allocation3 + $0x2c8] sm:$0xff]
    %v121 = vld [vmem:[#allocation3 + $0x2d0] sm:$0xff]
    %v122 = vld [vmem:[#allocation3 + $0x2d8] sm:$0xff]
    %v123 = vld [vmem:[#allocation3 + $0x2e0] sm:$0xff]
    %v124 = vld [vmem:[#allocation3 + $0x2e8] sm:$0xff]
    %v125 = vld [vmem:[#allocation3 + $0x2f0] sm:$0xff]
    %v126 = vld [vmem:[#allocation3 + $0x2f8] sm:$0xff]
    %v127 = vld [vmem:[#allocation3 + $0x300] sm:$0xff]
    %v128 = vld [vmem:[#allocation3 + $0x308] sm:$0xff]
    %v129 = vld [vmem:[#allocation3 + $0x310] sm:$0xff]
    %v130 = vld [vmem:[#allocation3 + $0x318] sm:$0xff]
    %v131 = vld [vmem:[#allocation3 + $0x320] sm:$0xff]
    %v132 = vld [vmem:[#allocation3 + $0x328] sm:$0xff]
    %v133 = vld [vmem:[#allocation3 + $0x330] sm:$0xff]
    %v134 = vld [vmem:[#allocation3 + $0x338] sm:$0xff]
    %v135 = vld [vmem:[#allocation3 + $0x340] sm:$0xff]
    %v136 = vld [vmem:[#allocation3 + $0x348] sm:$0xff]
    %v137 = vld [vmem:[#allocation3 + $0x350] sm:$0xff]
    %v138 = vld [vmem:[#allocation3 + $0x358] sm:$0xff]
    %v139 = vld [vmem:[#allocation3 + $0x360] sm:$0xff]
    %v140 = vld [vmem:[#allocation3 + $0x368] sm:$0xff]
    %v141 = vld [vmem:[#allocation3 + $0x370] sm:$0xff]
    %v142 = vld [vmem:[#allocation3 + $0x378] sm:$0xff]
    %v143 = vld [vmem:[#allocation3 + $0x380] sm:$0xff]
    %v144 = vld [vmem:[#allocation3 + $0x388] sm:$0xff]
    %v145 = vld [vmem:[#allocation3 + $0x390] sm:$0xff]
    %v146 = vld [vmem:[#allocation3 + $0x398] sm:$0xff]
    %v147 = vld [vmem:[#allocation3 + $0x3a0] sm:$0xff]
    %v148 = vld [vmem:[#allocation3 + $0x3a8] sm:$0xff]
    %v149 = vld [vmem:[#allocation3 + $0x3b0] sm:$0xff]
    %v150 = vld [vmem:[#allocation3 + $0x3b8] sm:$0xff]
    %v151 = vld [vmem:[#allocation3 + $0x3c0] sm:$0xff]
    %v152 = vld [vmem:[#allocation3 + $0x3c8] sm:$0xff]
    %v153 = vld [vmem:[#allocation3 + $0x3d0] sm:$0xff]
    %v154 = vld [vmem:[#allocation3 + $0x3d8] sm:$0xff]
    %v155 = vld [vmem:[#allocation3 + $0x3e0] sm:$0xff]
    %v156 = vld [vmem:[#allocation3 + $0x3e8] sm:$0xff]
    %v157 = vld [vmem:[#allocation3 + $0x3f0] sm:$0xff]
    %v158 = vld [vmem:[#allocation3 + $0x3f8] sm:$0xff]
    %v159 = vld [vmem:[#allocation3 + $0x400] sm:$0xff]
    %v160 = vld [vmem:[#allocation3 + $0x408] sm:$0xff]
    %v161 = vld [vmem:[#allocation3 + $0x410] sm:$0xff]
    %v162 = vld [vmem:[#allocation3 + $0x418] sm:$0xff]
    %v163 = vld [vmem:[#allocation3 + $0x420] sm:$0xff]
    %v164 = vld [vmem:[#allocation3 + $0x428] sm:$0xff]
    %v165 = vld [vmem:[#allocation3 + $0x430] sm:$0xff]
    %v166 = vld [vmem:[#allocation3 + $0x438] sm:$0xff]
    %v167 = vld [vmem:[#allocation3 + $0x440] sm:$0xff]
    %v168 = vld [vmem:[#allocation3 + $0x448] sm:$0xff]
    %v169 = vld [vmem:[#allocation3 + $0x450] sm:$0xff]
    %v170 = vld [vmem:[#allocation3 + $0x458] sm:$0xff]
    %v171 = vld [vmem:[#allocation3 + $0x460] sm:$0xff]
    %v172 = vld [vmem:[#allocation3 + $0x468] sm:$0xff]
    %v173 = vld [vmem:[#allocation3 + $0x470] sm:$0xff]
    %v174 = vld [vmem:[#allocation3 + $0x478] sm:$0xff]
    %v175 = vld [vmem:[#allocation3 + $0x480] sm:$0xff]
    %v176 = vld [vmem:[#allocation3 + $0x488] sm:$0xff]
    %v177 = vld [vmem:[#allocation3 + $0x490] sm:$0xff]
    %v178 = vld [vmem:[#allocation3 + $0x498] sm:$0xff]
    %v179 = vld [vmem:[#allocation3 + $0x4a0] sm:$0xff]
    %v180 = vld [vmem:[#allocation3 + $0x4a8] sm:$0xff]
    %v181 = vld [vmem:[#allocation3 + $0x4b0] sm:$0xff]
    %v182 = vld [vmem:[#allocation3 + $0x4b8] sm:$0xff]
    %v183 = vld [vmem:[#allocation3 + $0x4c0] sm:$0xff]
    %v184 = vld [vmem:[#allocation3 + $0x4c8] sm:$0xff]
    %v185 = vld [vmem:[#allocation3 + $0x4d0] sm:$0xff]
    %v186 = vld [vmem:[#allocation3 + $0x4d8] sm:$0xff]
    %v187 = vld [vmem:[#allocation3 + $0x4e0] sm:$0xff]
    %v188 = vld [vmem:[#allocation3 + $0x4e8] sm:$0xff]
    %v189 = vld [vmem:[#allocation3 + $0x4f0] sm:$0xff]
    %v190 = vld [vmem:[#allocation3 + $0x4f8] sm:$0xff]
    %v191 = vld [vmem:[#allocation3 + $0x500] sm:$0xff]
    %v192 = vld [vmem:[#allocation3 + $0x508] sm:$0xff]
    %v193 = vld [vmem:[#allocation3 + $0x510] sm:$0xff]
    %v194 = vld [vmem:[#allocation3 + $0x518] sm:$0xff]
    %v195 = vld [vmem:[#allocation3 + $0x520] sm:$0xff]
    %v196 = vld [vmem:[#allocation3 + $0x528] sm:$0xff]
    %v197 = vld [vmem:[#allocation3 + $0x530] sm:$0xff]
    %v198 = vld [vmem:[#allocation3 + $0x538] sm:$0xff]
    %v199 = vld [vmem:[#allocation3 + $0x540] sm:$0xff]
    %v200 = vld [vmem:[#allocation3 + $0x548] sm:$0xff]
    %v201 = vld [vmem:[#allocation3 + $0x550] sm:$0xff]
    %v202 = vld [vmem:[#allocation3 + $0x558] sm:$0xff]
    %v203 = vld [vmem:[#allocation3 + $0x560] sm:$0xff]
    %v204 = vld [vmem:[#allocation3 + $0x568] sm:$0xff]
    %v205 = vld [vmem:[#allocation3 + $0x570] sm:$0xff]
    %v206 = vld [vmem:[#allocation3 + $0x578] sm:$0xff]
    %v207 = vld [vmem:[#allocation3 + $0x580] sm:$0xff]
    %v208 = vld [vmem:[#allocation3 + $0x588] sm:$0xff]
    %v209 = vld [vmem:[#allocation3 + $0x590] sm:$0xff]
    %v210 = vld [vmem:[#allocation3 + $0x598] sm:$0xff]
    %v211 = vld [vmem:[#allocation3 + $0x5a0] sm:$0xff]
    %v212 = vld [vmem:[#allocation3 + $0x5a8] sm:$0xff]
    %v213 = vld [vmem:[#allocation3 + $0x5b0] sm:$0xff]
    %v214 = vld [vmem:[#allocation3 + $0x5b8] sm:$0xff]
    %v215 = vld [vmem:[#allocation3 + $0x5c0] sm:$0xff]
    %v216 = vld [vmem:[#allocation3 + $0x5c8] sm:$0xff]
    %v217 = vld [vmem:[#allocation3 + $0x5d0] sm:$0xff]
    %v218 = vld [vmem:[#allocation3 + $0x5d8] sm:$0xff]
    %v219 = vld [vmem:[#allocation3 + $0x5e0] sm:$0xff]
    %v220 = vld [vmem:[#allocation3 + $0x5e8] sm:$0xff]
    %v221 = vld [vmem:[#allocation3 + $0x5f0] sm:$0xff]
    %v222 = vld [vmem:[#allocation3 + $0x5f8] sm:$0xff]
    %v223 = vld [vmem:[#allocation3 + $0x600] sm:$0xff]
    %v224 = vld [vmem:[#allocation3 + $0x608] sm:$0xff]
    %v225 = vld [vmem:[#allocation3 + $0x610] sm:$0xff]
    %v226 = vld [vmem:[#allocation3 + $0x618] sm:$0xff]
    %v227 = vld [vmem:[#allocation3 + $0x620] sm:$0xff]
    %v228 = vld [vmem:[#allocation3 + $0x628] sm:$0xff]
    %v229 = vld [vmem:[#allocation3 + $0x630] sm:$0xff]
    %v230 = vld [vmem:[#allocation3 + $0x638] sm:$0xff]
    %v231 = vld [vmem:[#allocation3 + $0x640] sm:$0xff]
    %v232 = vld [vmem:[#allocation3 + $0x648] sm:$0xff]
    %v233 = vld [vmem:[#allocation3 + $0x650] sm:$0xff]
    %v234 = vld [vmem:[#allocation3 + $0x658] sm:$0xff]
    %v235 = vld [vmem:[#allocation3 + $0x660] sm:$0xff]
    %v236 = vld [vmem:[#allocation3 + $0x668] sm:$0xff]
    %v237 = vld [vmem:[#allocation3 + $0x670] sm:$0xff]
    %v238 = vld [vmem:[#allocation3 + $0x678] sm:$0xff]
    %v239 = vld [vmem:[#allocation3 + $0x680] sm:$0xff]
    %v240 = vld [vmem:[#allocation3 + $0x688] sm:$0xff]
    %v241 = vld [vmem:[#allocation3 + $0x690] sm:$0xff]
    %v242 = vld [vmem:[#allocation3 + $0x698] sm:$0xff]
    %v243 = vld [vmem:[#allocation3 + $0x6a0] sm:$0xff]
    %v244 = vld [vmem:[#allocation3 + $0x6a8] sm:$0xff]
    %v245 = vld [vmem:[#allocation3 + $0x6b0] sm:$0xff]
    %v246 = vld [vmem:[#allocation3 + $0x6b8] sm:$0xff]
    %v247 = vld [vmem:[#allocation3 + $0x6c0] sm:$0xff]
    %v248 = vld [vmem:[#allocation3 + $0x6c8] sm:$0xff]
    %v249 = vld [vmem:[#allocation3 + $0x6d0] sm:$0xff]
    %v250 = vld [vmem:[#allocation3 + $0x6d8] sm:$0xff]
    %v251 = vld [vmem:[#allocation3 + $0x6e0] sm:$0xff]
    %v252 = vld [vmem:[#allocation3 + $0x6e8] sm:$0xff]
    %v253 = vld [vmem:[#allocation3 + $0x6f0] sm:$0xff]
    %v254 = vld [vmem:[#allocation3 + $0x6f8] sm:$0xff]
    %v255 = vld [vmem:[#allocation3 + $0x700] sm:$0xff]
    %v256 = vld [vmem:[#allocation3 + $0x708] sm:$0xff]
    %v257 = vld [vmem:[#allocation3 + $0x710] sm:$0xff]
    %v258 = vld [vmem:[#allocation3 + $0x718] sm:$0xff]
    %v259 = vld [vmem:[#allocation3 + $0x720] sm:$0xff]
    %v260 = vld [vmem:[#allocation3 + $0x728] sm:$0xff]
    %v261 = vld [vmem:[#allocation3 + $0x730] sm:$0xff]
    %v262 = vld [vmem:[#allocation3 + $0x738] sm:$0xff]
    %v263 = vld [vmem:[#allocation3 + $0x740] sm:$0xff]
    %v264 = vld [vmem:[#allocation3 + $0x748] sm:$0xff]
    %v265 = vld [vmem:[#allocation3 + $0x750] sm:$0xff]
    %v266 = vld [vmem:[#allocation3 + $0x758] sm:$0xff]
    %v267 = vld [vmem:[#allocation3 + $0x760] sm:$0xff]
    %v268 = vld [vmem:[#allocation3 + $0x768] sm:$0xff]
    %v269 = vld [vmem:[#allocation3 + $0x770] sm:$0xff]
    %v270 = vld [vmem:[#allocation3 + $0x778] sm:$0xff]
    %v271 = vld [vmem:[#allocation3 + $0x780] sm:$0xff]
    %v272 = vld [vmem:[#allocation3 + $0x788] sm:$0xff]
    %v273 = vld [vmem:[#allocation3 + $0x790] sm:$0xff]
    %v274 = vld [vmem:[#allocation3 + $0x798] sm:$0xff]
    %v275 = vld [vmem:[#allocation3 + $0x7a0] sm:$0xff]
    %v276 = vld [vmem:[#allocation3 + $0x7a8] sm:$0xff]
    %v277 = vld [vmem:[#allocation3 + $0x7b0] sm:$0xff]
    %v278 = vld [vmem:[#allocation3 + $0x7b8] sm:$0xff]
    %v279 = vld [vmem:[#allocation3 + $0x7c0] sm:$0xff]
    %v280 = vld [vmem:[#allocation3 + $0x7c8] sm:$0xff]
    %v281 = vld [vmem:[#allocation3 + $0x7d0] sm:$0xff]
    %v282 = vld [vmem:[#allocation3 + $0x7d8] sm:$0xff]
    %v283 = vld [vmem:[#allocation3 + $0x7e0] sm:$0xff]
    %v284 = vld [vmem:[#allocation3 + $0x7e8] sm:$0xff]
    %v285 = vld [vmem:[#allocation3 + $0x7f0] sm:$0xff]
    %v286 = vld [vmem:[#allocation3 + $0x7f8] sm:$0xff]
    %v287 = vld [vmem:[#allocation3 + $0x800] sm:$0xff]
    %v288 = vld [vmem:[#allocation3 + $0x808] sm:$0xff]
    %v289 = vld [vmem:[#allocation3 + $0x810] sm:$0xff]
    %v290 = vld [vmem:[#allocation3 + $0x818] sm:$0xff]
    %v291 = vld [vmem:[#allocation3 + $0x820] sm:$0xff]
    %v292 = vld [vmem:[#allocation3 + $0x828] sm:$0xff]
    %v293 = vld [vmem:[#allocation3 + $0x830] sm:$0xff]
    %v294 = vld [vmem:[#allocation3 + $0x838] sm:$0xff]
    %v295 = vld [vmem:[#allocation3 + $0x840] sm:$0xff]
    %v296 = vld [vmem:[#allocation3 + $0x848] sm:$0xff]
    %v297 = vld [vmem:[#allocation3 + $0x850] sm:$0xff]
    %v298 = vld [vmem:[#allocation3 + $0x858] sm:$0xff]
    %v299 = vld [vmem:[#allocation3 + $0x860] sm:$0xff]
    %v300 = vld [vmem:[#allocation3 + $0x868] sm:$0xff]
    %v301 = vld [vmem:[#allocation3 + $0x870] sm:$0xff]
    %v302 = vld [vmem:[#allocation3 + $0x878] sm:$0xff]
    %v303 = vld [vmem:[#allocation3 + $0x880] sm:$0xff]
    %v304 = vld [vmem:[#allocation3 + $0x888] sm:$0xff]
    %v305 = vld [vmem:[#allocation3 + $0x890] sm:$0xff]
    %v306 = vld [vmem:[#allocation3 + $0x898] sm:$0xff]
    %v307 = vld [vmem:[#allocation3 + $0x8a0] sm:$0xff]
    %v308 = vld [vmem:[#allocation3 + $0x8a8] sm:$0xff]
    %v309 = vld [vmem:[#allocation3 + $0x8b0] sm:$0xff]
    %v310 = vld [vmem:[#allocation3 + $0x8b8] sm:$0xff]
    %v311 = vld [vmem:[#allocation3 + $0x8c0] sm:$0xff]
    %v312 = vld [vmem:[#allocation3 + $0x8c8] sm:$0xff]
    %v313 = vld [vmem:[#allocation3 + $0x8d0] sm:$0xff]
    %v314 = vld [vmem:[#allocation3 + $0x8d8] sm:$0xff]
    %v315 = vld [vmem:[#allocation3 + $0x8e0] sm:$0xff]
    %v316 = vld [vmem:[#allocation3 + $0x8e8] sm:$0xff]
    %v317 = vld [vmem:[#allocation3 + $0x8f0] sm:$0xff]
    %v318 = vld [vmem:[#allocation3 + $0x8f8] sm:$0xff]
    %v319 = vld [vmem:[#allocation3 + $0x900] sm:$0xff]
    %v320 = vld [vmem:[#allocation3 + $0x908] sm:$0xff]
    %v321 = vld [vmem:[#allocation3 + $0x910] sm:$0xff]
    %v322 = vld [vmem:[#allocation3 + $0x918] sm:$0xff]
    %v323 = vld [vmem:[#allocation3 + $0x920] sm:$0xff]
    %v324 = vld [vmem:[#allocation3 + $0x928] sm:$0xff]
    %v325 = vld [vmem:[#allocation3 + $0x930] sm:$0xff]
    %v326 = vld [vmem:[#allocation3 + $0x938] sm:$0xff]
    %v327 = vld [vmem:[#allocation3 + $0x940] sm:$0xff]
    %v328 = vld [vmem:[#allocation3 + $0x948] sm:$0xff]
    %v329 = vld [vmem:[#allocation3 + $0x950] sm:$0xff]
    %v330 = vld [vmem:[#allocation3 + $0x958] sm:$0xff]
    %v331 = vld [vmem:[#allocation3 + $0x960] sm:$0xff]
    %v332 = vld [vmem:[#allocation3 + $0x968] sm:$0xff]
    %v333 = vld [vmem:[#allocation3 + $0x970] sm:$0xff]
    %v334 = vld [vmem:[#allocation3 + $0x978] sm:$0xff]
    %v335 = vld [vmem:[#allocation3 + $0x980] sm:$0xff]
    %v336 = vld [vmem:[#allocation3 + $0x988] sm:$0xff]
    %v337 = vld [vmem:[#allocation3 + $0x990] sm:$0xff]
    %v338 = vld [vmem:[#allocation3 + $0x998] sm:$0xff]
    %v339 = vld [vmem:[#allocation3 + $0x9a0] sm:$0xff]
    %v340 = vld [vmem:[#allocation3 + $0x9a8] sm:$0xff]
    %v341 = vld [vmem:[#allocation3 + $0x9b0] sm:$0xff]
    %v342 = vld [vmem:[#allocation3 + $0x9b8] sm:$0xff]
    %v343 = vld [vmem:[#allocation3 + $0x9c0] sm:$0xff]
    %v344 = vld [vmem:[#allocation3 + $0x9c8] sm:$0xff]
    %v345 = vld [vmem:[#allocation3 + $0x9d0] sm:$0xff]
    %v346 = vld [vmem:[#allocation3 + $0x9d8] sm:$0xff]
    %v347 = vld [vmem:[#allocation3 + $0x9e0] sm:$0xff]
    %v348 = vld [vmem:[#allocation3 + $0x9e8] sm:$0xff]
    %v349 = vld [vmem:[#allocation3 + $0x9f0] sm:$0xff]
    %v350 = vld [vmem:[#allocation3 + $0x9f8] sm:$0xff]
    %v351 = vmul.f32 %v31, %v31
    %v352 = vmul.f32 %v32, %v32
    %v353 = vmul.f32 %v33, %v33
    %v354 = vmul.f32 %v34, %v34
    %v355 = vmul.f32 %v35, %v35
    %v356 = vmul.f32 %v36, %v36
    %v357 = vmul.f32 %v37, %v37
    %v358 = vmul.f32 %v38, %v38
    %v359 = vmul.f32 %v39, %v39
    %v360 = vmul.f32 %v40, %v40
    %v361 = vmul.f32 %v41, %v41
    %v362 = vmul.f32 %v42, %v42
    %v363 = vmul.f32 %v43, %v43
    %v364 = vmul.f32 %v44, %v44
    %v365 = vmul.f32 %v45, %v45
    %v366 = vmul.f32 %v46, %v46
    %v367 = vmul.f32 %v47, %v47
    %v368 = vmul.f32 %v48, %v48
    %v369 = vmul.f32 %v49, %v49
    %v370 = vmul.f32 %v50, %v50
    %v371 = vmul.f32 %v51, %v51
    %v372 = vmul.f32 %v52, %v52
    %v373 = vmul.f32 %v53, %v53
    %v374 = vmul.f32 %v54, %v54
    %v375 = vmul.f32 %v55, %v55
    %v376 = vmul.f32 %v56, %v56
    %v377 = vmul.f32 %v57, %v57
    %v378 = vmul.f32 %v58, %v58
    %v379 = vmul.f32 %v59, %v59
    %v380 = vmul.f32 %v60, %v60
    %v381 = vmul.f32 %v61, %v61
    %v382 = vmul.f32 %v62, %v62
    %v383 = vmul.f32 %v63, %v63
    %v384 = vmul.f32 %v64, %v64
    %v385 = vmul.f32 %v65, %v65
    %v386 = vmul.f32 %v66, %v66
    %v387 = vmul.f32 %v67, %v67
    %v388 = vmul.f32 %v68, %v68
    %v389 = vmul.f32 %v69, %v69
    %v390 = vmul.f32 %v70, %v70
    %v391 = vmul.f32 %v71, %v71
    %v392 = vmul.f32 %v72, %v72
    %v393 = vmul.f32 %v73, %v73
    %v394 = vmul.f32 %v74, %v74
    %v395 = vmul.f32 %v75, %v75
    %v396 = vmul.f32 %v76, %v76
    %v397 = vmul.f32 %v77, %v77
    %v398 = vmul.f32 %v78, %v78
    %v399 = vmul.f32 %v79, %v79
    %v400 = vmul.f32 %v80, %v80
    %v401 = vmul.f32 %v81, %v81
    %v402 = vmul.f32 %v82, %v82
    %v403 = vmul.f32 %v83, %v83
    %v404 = vmul.f32 %v84, %v84
    %v405 = vmul.f32 %v85, %v85
    %v406 = vmul.f32 %v86, %v86
    %v407 = vmul.f32 %v87, %v87
    %v408 = vmul.f32 %v88, %v88
    %v409 = vmul.f32 %v89, %v89
    %v410 = vmul.f32 %v90, %v90
    %v411 = vmul.f32 %v91, %v91
    %v412 = vmul.f32 %v92, %v92
    %v413 = vmul.f32 %v93, %v93
    %v414 = vmul.f32 %v94, %v94
    %v415 = vmul.f32 %v95, %v95
    %v416 = vmul.f32 %v96, %v96
    %v417 = vmul.f32 %v97, %v97
    %v418 = vmul.f32 %v98, %v98
    %v419 = vmul.f32 %v99, %v99
    %v420 = vmul.f32 %v100, %v100
    %v421 = vmul.f32 %v101, %v101
    %v422 = vmul.f32 %v102, %v102
    %v423 = vmul.f32 %v103, %v103
    %v424 = vmul.f32 %v104, %v104
    %v425 = vmul.f32 %v105, %v105
    %v426 = vmul.f32 %v106, %v106
    %v427 = vmul.f32 %v107, %v107
    %v428 = vmul.f32 %v108, %v108
    %v429 = vmul.f32 %v109, %v109
    %v430 = vmul.f32 %v110, %v110
    %v431 = vmul.f32 %v111, %v111
    %v432 = vmul.f32 %v112, %v112
    %v433 = vmul.f32 %v113, %v113
    %v434 = vmul.f32 %v114, %v114
    %v435 = vmul.f32 %v115, %v115
    %v436 = vmul.f32 %v116, %v116
    %v437 = vmul.f32 %v117, %v117
    %v438 = vmul.f32 %v118, %v118
    %v439 = vmul.f32 %v119, %v119
    %v440 = vmul.f32 %v120, %v120
    %v441 = vmul.f32 %v121, %v121
    %v442 = vmul.f32 %v122, %v122
    %v443 = vmul.f32 %v123, %v123
    %v444 = vmul.f32 %v124, %v124
    %v445 = vmul.f32 %v125, %v125
    %v446 = vmul.f32 %v126, %v126
    %v447 = vmul.f32 %v127, %v127
    %v448 = vmul.f32 %v128, %v128
    %v449 = vmul.f32 %v129, %v129
    %v450 = vmul.f32 %v130, %v130
    %v451 = vmul.f32 %v131, %v131
    %v452 = vmul.f32 %v132, %v132
    %v453 = vmul.f32 %v133, %v133
    %v454 = vmul.f32 %v134, %v134
    %v455 = vmul.f32 %v135, %v135
    %v456 = vmul.f32 %v136, %v136
    %v457 = vmul.f32 %v137, %v137
    %v458 = vmul.f32 %v138, %v138
    %v459 = vmul.f32 %v139, %v139
    %v460 = vmul.f32 %v140, %v140
    %v461 = vmul.f32 %v141, %v141
    %v462 = vmul.f32 %v142, %v142
    %v463 = vmul.f32 %v143, %v143
    %v464 = vmul.f32 %v144, %v144
    %v465 = vmul.f32 %v145, %v145
    %v466 = vmul.f32 %v146, %v146
    %v467 = vmul.f32 %v147, %v147
    %v468 = vmul.f32 %v148, %v148
    %v469 = vmul.f32 %v149, %v149
    %v470 = vmul.f32 %v150, %v150
    %v471 = vmul.f32 %v151, %v151
    %v472 = vmul.f32 %v152, %v152
    %v473 = vmul.f32 %v153, %v153
    %v474 = vmul.f32 %v154, %v154
    %v475 = vmul.f32 %v155, %v155
    %v476 = vmul.f32 %v156, %v156
    %v477 = vmul.f32 %v157, %v157
    %v478 = vmul.f32 %v158, %v158
    %v479 = vmul.f32 %v159, %v159
    %v480 = vmul.f32 %v160, %v160
    %v481 = vmul.f32 %v161, %v161
    %v482 = vmul.f32 %v162, %v162
    %v483 = vmul.f32 %v163, %v163
    %v484 = vmul.f32 %v164, %v164
    %v485 = vmul.f32 %v165, %v165
    %v486 = vmul.f32 %v166, %v166
    %v487 = vmul.f32 %v167, %v167
    %v488 = vmul.f32 %v168, %v168
    %v489 = vmul.f32 %v169, %v169
    %v490 = vmul.f32 %v170, %v170
    %v491 = vmul.f32 %v171, %v171
    %v492 = vmul.f32 %v172, %v172
    %v493 = vmul.f32 %v173, %v173
    %v494 = vmul.f32 %v174, %v174
    %v495 = vmul.f32 %v175, %v175
    %v496 = vmul.f32 %v176, %v176
    %v497 = vmul.f32 %v177, %v177
    %v498 = vmul.f32 %v178, %v178
    %v499 = vmul.f32 %v179, %v179
    %v500 = vmul.f32 %v180, %v180
    %v501 = vmul.f32 %v181, %v181
    %v502 = vmul.f32 %v182, %v182
    %v503 = vmul.f32 %v183, %v183
    %v504 = vmul.f32 %v184, %v184
    %v505 = vmul.f32 %v185, %v185
    %v506 = vmul.f32 %v186, %v186
    %v507 = vmul.f32 %v187, %v187
    %v508 = vmul.f32 %v188, %v188
    %v509 = vmul.f32 %v189, %v189
    %v510 = vmul.f32 %v190, %v190
    %v511 = vmul.f32 %v191, %v191
    %v512 = vmul.f32 %v192, %v192
    %v513 = vmul.f32 %v193, %v193
    %v514 = vmul.f32 %v194, %v194
    %v515 = vmul.f32 %v195, %v195
    %v516 = vmul.f32 %v196, %v196
    %v517 = vmul.f32 %v197, %v197
    %v518 = vmul.f32 %v198, %v198
    %v519 = vmul.f32 %v199, %v199
    %v520 = vmul.f32 %v200, %v200
    %v521 = vmul.f32 %v201, %v201
    %v522 = vmul.f32 %v202, %v202
    %v523 = vmul.f32 %v203, %v203
    %v524 = vmul.f32 %v204, %v204
    %v525 = vmul.f32 %v205, %v205
    %v526 = vmul.f32 %v206, %v206
    %v527 = vmul.f32 %v207, %v207
    %v528 = vmul.f32 %v208, %v208
    %v529 = vmul.f32 %v209, %v209
    %v530 = vmul.f32 %v210, %v210
    %v531 = vmul.f32 %v211, %v211
    %v532 = vmul.f32 %v212, %v212
    %v533 = vmul.f32 %v213, %v213
    %v534 = vmul.f32 %v214, %v214
    %v535 = vmul.f32 %v215, %v215
    %v536 = vmul.f32 %v216, %v216
    %v537 = vmul.f32 %v217, %v217
    %v538 = vmul.f32 %v218, %v218
    %v539 = vmul.f32 %v219, %v219
    %v540 = vmul.f32 %v220, %v220
    %v541 = vmul.f32 %v221, %v221
    %v542 = vmul.f32 %v222, %v222
    %v543 = vmul.f32 %v223, %v223
    %v544 = vmul.f32 %v224, %v224
    %v545 = vmul.f32 %v225, %v225
    %v546 = vmul.f32 %v226, %v226
    %v547 = vmul.f32 %v227, %v227
    %v548 = vmul.f32 %v228, %v228
    %v549 = vmul.f32 %v229, %v229
    %v550 = vmul.f32 %v230, %v230
    %v551 = vmul.f32 %v231, %v231
    %v552 = vmul.f32 %v232, %v232
    %v553 = vmul.f32 %v233, %v233
    %v554 = vmul.f32 %v234, %v234
    %v555 = vmul.f32 %v235, %v235
    %v556 = vmul.f32 %v236, %v236
    %v557 = vmul.f32 %v237, %v237
    %v558 = vmul.f32 %v238, %v238
    %v559 = vmul.f32 %v239, %v239
    %v560 = vmul.f32 %v240, %v240
    %v561 = vmul.f32 %v241, %v241
    %v562 = vmul.f32 %v242, %v242
    %v563 = vmul.f32 %v243, %v243
    %v564 = vmul.f32 %v244, %v244
    %v565 = vmul.f32 %v245, %v245
    %v566 = vmul.f32 %v246, %v246
    %v567 = vmul.f32 %v247, %v247
    %v568 = vmul.f32 %v248, %v248
    %v569 = vmul.f32 %v249, %v249
    %v570 = vmul.f32 %v250, %v250
    %v571 = vmul.f32 %v251, %v251
    %v572 = vmul.f32 %v252, %v252
    %v573 = vmul.f32 %v253, %v253
    %v574 = vmul.f32 %v254, %v254
    %v575 = vmul.f32 %v255, %v255
    %v576 = vmul.f32 %v256, %v256
    %v577 = vmul.f32 %v257, %v257
    %v578 = vmul.f32 %v258, %v258
    %v579 = vmul.f32 %v259, %v259
    %v580 = vmul.f32 %v260, %v260
    %v581 = vmul.f32 %v261, %v261
    %v582 = vmul.f32 %v262, %v262
    %v583 = vmul.f32 %v263, %v263
    %v584 = vmul.f32 %v264, %v264
    %v585 = vmul.f32 %v265, %v265
    %v586 = vmul.f32 %v266, %v266
    %v587 = vmul.f32 %v267, %v267
    %v588 = vmul.f32 %v268, %v268
    %v589 = vmul.f32 %v269, %v269
    %v590 = vmul.f32 %v270, %v270
    %v591 = vmul.f32 %v271, %v271
    %v592 = vmul.f32 %v272, %v272
    %v593 = vmul.f32 %v273, %v273
    %v594 = vmul.f32 %v274, %v274
    %v595 = vmul.f32 %v275, %v275
    %v596 = vmul.f32 %v276, %v276
    %v597 = vmul.f32 %v277, %v277
    %v598 = vmul.f32 %v278, %v278
    %v599 = vmul.f32 %v279, %v279
    %v600 = vmul.f32 %v280, %v280
    %v601 = vmul.f32 %v281, %v281
    %v602 = vmul.f32 %v282, %v282
    %v603 = vmul.f32 %v283, %v283
    %v604 = vmul.f32 %v284, %v284
    %v605 = vmul.f32 %v285, %v285
    %v606 = vmul.f32 %v286, %v286
    %v607 = vmul.f32 %v287, %v287
    %v608 = vmul.f32 %v288, %v288
    %v609 = vmul.f32 %v289, %v289
    %v610 = vmul.f32 %v290, %v290
    %v611 = vmul.f32 %v291, %v291
    %v612 = vmul.f32 %v292, %v292
    %v613 = vmul.f32 %v293, %v293
    %v614 = vmul.f32 %v294, %v294
    %v615 = vmul.f32 %v295, %v295
    %v616 = vmul.f32 %v296, %v296
    %v617 = vmul.f32 %v297, %v297
    %v618 = vmul.f32 %v298, %v298
    %v619 = vmul.f32 %v299, %v299
    %v620 = vmul.f32 %v300, %v300
    %v621 = vmul.f32 %v301, %v301
    %v622 = vmul.f32 %v302, %v302
    %v623 = vmul.f32 %v303, %v303
    %v624 = vmul.f32 %v304, %v304
    %v625 = vmul.f32 %v305, %v305
    %v626 = vmul.f32 %v306, %v306
    %v627 = vmul.f32 %v307, %v307
    %v628 = vmul.f32 %v308, %v308
    %v629 = vmul.f32 %v309, %v309
    %v630 = vmul.f32 %v310, %v310
    %v631 = vmul.f32 %v311, %v311
    %v632 = vmul.f32 %v312, %v312
    %v633 = vmul.f32 %v313, %v313
    %v634 = vmul.f32 %v314, %v314
    %v635 = vmul.f32 %v315, %v315
    %v636 = vmul.f32 %v316, %v316
    %v637 = vmul.f32 %v317, %v317
    %v638 = vmul.f32 %v318, %v318
    %v639 = vmul.f32 %v319, %v319
    %v640 = vmul.f32 %v320, %v320
    %v641 = vmul.f32 %v321, %v321
    %v642 = vmul.f32 %v322, %v322
    %v643 = vmul.f32 %v323, %v323
    %v644 = vmul.f32 %v324, %v324
    %v645 = vmul.f32 %v325, %v325
    %v646 = vmul.f32 %v326, %v326
    %v647 = vmul.f32 %v327, %v327
    %v648 = vmul.f32 %v328, %v328
    %v649 = vmul.f32 %v329, %v329
    %v650 = vmul.f32 %v330, %v330
    %v651 = vmul.f32 %v331, %v331
    %v652 = vmul.f32 %v332, %v332
    %v653 = vmul.f32 %v333, %v333
    %v654 = vmul.f32 %v334, %v334
    %v655 = vmul.f32 %v335, %v335
    %v656 = vmul.f32 %v336, %v336
    %v657 = vmul.f32 %v337, %v337
    %v658 = vmul.f32 %v338, %v338
    %v659 = vmul.f32 %v339, %v339
    %v660 = vmul.f32 %v340, %v340
    %v661 = vmul.f32 %v341, %v341
    %v662 = vmul.f32 %v342, %v342
    %v663 = vmul.f32 %v343, %v343
    %v664 = vmul.f32 %v344, %v344
    %v665 = vmul.f32 %v345, %v345
    %v666 = vmul.f32 %v346, %v346
    %v667 = vmul.f32 %v347, %v347
    %v668 = vmul.f32 %v348, %v348
    %v669 = vmul.f32 %v349, %v349
    %v670 = vmul.f32 %v350, %v350
    %v671 = vld [vmem:[#allocation2] sm:$0xff]
    %v672 = vld [vmem:[#allocation2 + $0x8] sm:$0xff]
    %v673 = vld [vmem:[#allocation2 + $0x10] sm:$0xff]
    %v674 = vld [vmem:[#allocation2 + $0x18] sm:$0xff]
    %v675 = vadd.f32 %v351, %v355
    %v676 = vadd.f32 %v675, %v359
    %v677 = vadd.f32 %v676, %v363
    %v678 = vadd.f32 %v677, %v367
    %v679 = vadd.f32 %v678, %v371
    %v680 = vadd.f32 %v679, %v375
    %v681 = vadd.f32 %v680, %v379
    %v682 = vadd.f32 %v681, %v383
    %v683 = vadd.f32 %v682, %v387
    %v684 = vadd.f32 %v683, %v391
    %v685 = vadd.f32 %v684, %v395
    %v686 = vadd.f32 %v685, %v399
    %v687 = vadd.f32 %v686, %v403
    %v688 = vadd.f32 %v687, %v407
    %v689 = vadd.f32 %v688, %v411
    %v690 = vadd.f32 %v689, %v415
    %v691 = vadd.f32 %v690, %v419
    %v692 = vadd.f32 %v691, %v423
    %v693 = vadd.f32 %v692, %v427
    %v694 = vadd.f32 %v693, %v431
    %v695 = vadd.f32 %v694, %v435
    %v696 = vadd.f32 %v695, %v439
    %v697 = vadd.f32 %v696, %v443
    %v698 = vadd.f32 %v697, %v447
    %v699 = vadd.f32 %v698, %v451
    %v700 = vadd.f32 %v699, %v455
    %v701 = vadd.f32 %v700, %v459
    %v702 = vadd.f32 %v701, %v463
    %v703 = vadd.f32 %v702, %v467
    %v704 = vadd.f32 %v703, %v471
    %v705 = vadd.f32 %v704, %v475
    %v706 = vadd.f32 %v705, %v479
    %v707 = vadd.f32 %v706, %v483
    %v708 = vadd.f32 %v707, %v487
    %v709 = vadd.f32 %v708, %v491
    %v710 = vadd.f32 %v709, %v495
    %v711 = vadd.f32 %v710, %v499
    %v712 = vadd.f32 %v711, %v503
    %v713 = vadd.f32 %v712, %v507
    %v714 = vadd.f32 %v713, %v511
    %v715 = vadd.f32 %v714, %v515
    %v716 = vadd.f32 %v715, %v519
    %v717 = vadd.f32 %v716, %v523
    %v718 = vadd.f32 %v717, %v527
    %v719 = vadd.f32 %v718, %v531
    %v720 = vadd.f32 %v719, %v535
    %v721 = vadd.f32 %v720, %v539
    %v722 = vadd.f32 %v721, %v543
    %v723 = vadd.f32 %v722, %v547
    %v724 = vadd.f32 %v723, %v551
    %v725 = vadd.f32 %v724, %v555
    %v726 = vadd.f32 %v725, %v559
    %v727 = vadd.f32 %v726, %v563
    %v728 = vadd.f32 %v727, %v567
    %v729 = vadd.f32 %v728, %v571
    %v730 = vadd.f32 %v729, %v575
    %v731 = vadd.f32 %v730, %v579
    %v732 = vadd.f32 %v731, %v583
    %v733 = vadd.f32 %v732, %v587
    %v734 = vadd.f32 %v733, %v591
    %v735 = vadd.f32 %v734, %v595
    %v736 = vadd.f32 %v735, %v599
    %v737 = vadd.f32 %v736, %v603
    %v738 = vadd.f32 %v737, %v607
    %v739 = vadd.f32 %v738, %v611
    %v740 = vadd.f32 %v739, %v615
    %v741 = vadd.f32 %v740, %v619
    %v742 = vadd.f32 %v741, %v623
    %v743 = vadd.f32 %v742, %v627
    %v744 = vadd.f32 %v743, %v631
    %v745 = vadd.f32 %v744, %v635
    %v746 = vadd.f32 %v745, %v639
    %v747 = vadd.f32 %v746, %v643
    %v748 = vadd.f32 %v747, %v647
    %v749 = vadd.f32 %v748, %v651
    %v750 = vadd.f32 %v749, %v655
    %v751 = vadd.f32 %v750, %v659
    %v752 = vadd.f32 %v751, %v663
    %v753 = vadd.f32 %v752, %v667
    %v754 = vadd.f32 %v352, %v356
    %v755 = vadd.f32 %v754, %v360
    %v756 = vadd.f32 %v755, %v364
    %v757 = vadd.f32 %v756, %v368
    %v758 = vadd.f32 %v757, %v372
    %v759 = vadd.f32 %v758, %v376
    %v760 = vadd.f32 %v759, %v380
    %v761 = vadd.f32 %v760, %v384
    %v762 = vadd.f32 %v761, %v388
    %v763 = vadd.f32 %v762, %v392
    %v764 = vadd.f32 %v763, %v396
    %v765 = vadd.f32 %v764, %v400
    %v766 = vadd.f32 %v765, %v404
    %v767 = vadd.f32 %v766, %v408
    %v768 = vadd.f32 %v767, %v412
    %v769 = vadd.f32 %v768, %v416
    %v770 = vadd.f32 %v769, %v420
    %v771 = vadd.f32 %v770, %v424
    %v772 = vadd.f32 %v771, %v428
    %v773 = vadd.f32 %v772, %v432
    %v774 = vadd.f32 %v773, %v436
    %v775 = vadd.f32 %v774, %v440
    %v776 = vadd.f32 %v775, %v444
    %v777 = vadd.f32 %v776, %v448
    %v778 = vadd.f32 %v777, %v452
    %v779 = vadd.f32 %v778, %v456
    %v780 = vadd.f32 %v779, %v460
    %v781 = vadd.f32 %v780, %v464
    %v782 = vadd.f32 %v781, %v468
    %v783 = vadd.f32 %v782, %v472
    %v784 = vadd.f32 %v783, %v476
    %v785 = vadd.f32 %v784, %v480
    %v786 = vadd.f32 %v785, %v484
    %v787 = vadd.f32 %v786, %v488
    %v788 = vadd.f32 %v787, %v492
    %v789 = vadd.f32 %v788, %v496
    %v790 = vadd.f32 %v789, %v500
    %v791 = vadd.f32 %v790, %v504
    %v792 = vadd.f32 %v791, %v508
    %v793 = vadd.f32 %v792, %v512
    %v794 = vadd.f32 %v793, %v516
    %v795 = vadd.f32 %v794, %v520
    %v796 = vadd.f32 %v795, %v524
    %v797 = vadd.f32 %v796, %v528
    %v798 = vadd.f32 %v797, %v532
    %v799 = vadd.f32 %v798, %v536
    %v800 = vadd.f32 %v799, %v540
    %v801 = vadd.f32 %v800, %v544
    %v802 = vadd.f32 %v801, %v548
    %v803 = vadd.f32 %v802, %v552
    %v804 = vadd.f32 %v803, %v556
    %v805 = vadd.f32 %v804, %v560
    %v806 = vadd.f32 %v805, %v564
    %v807 = vadd.f32 %v806, %v568
    %v808 = vadd.f32 %v807, %v572
    %v809 = vadd.f32 %v808, %v576
    %v810 = vadd.f32 %v809, %v580
    %v811 = vadd.f32 %v810, %v584
    %v812 = vadd.f32 %v811, %v588
    %v813 = vadd.f32 %v812, %v592
    %v814 = vadd.f32 %v813, %v596
    %v815 = vadd.f32 %v814, %v600
    %v816 = vadd.f32 %v815, %v604
    %v817 = vadd.f32 %v816, %v608
    %v818 = vadd.f32 %v817, %v612
    %v819 = vadd.f32 %v818, %v616
    %v820 = vadd.f32 %v819, %v620
    %v821 = vadd.f32 %v820, %v624
    %v822 = vadd.f32 %v821, %v628
    %v823 = vadd.f32 %v822, %v632
    %v824 = vadd.f32 %v823, %v636
    %v825 = vadd.f32 %v824, %v640
    %v826 = vadd.f32 %v825, %v644
    %v827 = vadd.f32 %v826, %v648
    %v828 = vadd.f32 %v827, %v652
    %v829 = vadd.f32 %v828, %v656
    %v830 = vadd.f32 %v829, %v660
    %v831 = vadd.f32 %v830, %v664
    %v832 = vadd.f32 %v831, %v668
    %v833 = vadd.f32 %v353, %v357
    %v834 = vadd.f32 %v833, %v361
    %v835 = vadd.f32 %v834, %v365
    %v836 = vadd.f32 %v835, %v369
    %v837 = vadd.f32 %v836, %v373
    %v838 = vadd.f32 %v837, %v377
    %v839 = vadd.f32 %v838, %v381
    %v840 = vadd.f32 %v839, %v385
    %v841 = vadd.f32 %v840, %v389
    %v842 = vadd.f32 %v841, %v393
    %v843 = vadd.f32 %v842, %v397
    %v844 = vadd.f32 %v843, %v401
    %v845 = vadd.f32 %v844, %v405
    %v846 = vadd.f32 %v845, %v409
    %v847 = vadd.f32 %v846, %v413
    %v848 = vadd.f32 %v847, %v417
    %v849 = vadd.f32 %v848, %v421
    %v850 = vadd.f32 %v849, %v425
    %v851 = vadd.f32 %v850, %v429
    %v852 = vadd.f32 %v851, %v433
    %v853 = vadd.f32 %v852, %v437
    %v854 = vadd.f32 %v853, %v441
    %v855 = vadd.f32 %v854, %v445
    %v856 = vadd.f32 %v855, %v449
    %v857 = vadd.f32 %v856, %v453
    %v858 = vadd.f32 %v857, %v457
    %v859 = vadd.f32 %v858, %v461
    %v860 = vadd.f32 %v859, %v465
    %v861 = vadd.f32 %v860, %v469
    %v862 = vadd.f32 %v861, %v473
    %v863 = vadd.f32 %v862, %v477
    %v864 = vadd.f32 %v863, %v481
    %v865 = vadd.f32 %v864, %v485
    %v866 = vadd.f32 %v865, %v489
    %v867 = vadd.f32 %v866, %v493
    %v868 = vadd.f32 %v867, %v497
    %v869 = vadd.f32 %v868, %v501
    %v870 = vadd.f32 %v869, %v505
    %v871 = vadd.f32 %v870, %v509
    %v872 = vadd.f32 %v871, %v513
    %v873 = vadd.f32 %v872, %v517
    %v874 = vadd.f32 %v873, %v521
    %v875 = vadd.f32 %v874, %v525
    %v876 = vadd.f32 %v875, %v529
    %v877 = vadd.f32 %v876, %v533
    %v878 = vadd.f32 %v877, %v537
    %v879 = vadd.f32 %v878, %v541
    %v880 = vadd.f32 %v879, %v545
    %v881 = vadd.f32 %v880, %v549
    %v882 = vadd.f32 %v881, %v553
    %v883 = vadd.f32 %v882, %v557
    %v884 = vadd.f32 %v883, %v561
    %v885 = vadd.f32 %v884, %v565
    %v886 = vadd.f32 %v885, %v569
    %v887 = vadd.f32 %v886, %v573
    %v888 = vadd.f32 %v887, %v577
    %v889 = vadd.f32 %v888, %v581
    %v890 = vadd.f32 %v889, %v585
    %v891 = vadd.f32 %v890, %v589
    %v892 = vadd.f32 %v891, %v593
    %v893 = vadd.f32 %v892, %v597
    %v894 = vadd.f32 %v893, %v601
    %v895 = vadd.f32 %v894, %v605
    %v896 = vadd.f32 %v895, %v609
    %v897 = vadd.f32 %v896, %v613
    %v898 = vadd.f32 %v897, %v617
    %v899 = vadd.f32 %v898, %v621
    %v900 = vadd.f32 %v899, %v625
    %v901 = vadd.f32 %v900, %v629
    %v902 = vadd.f32 %v901, %v633
    %v903 = vadd.f32 %v902, %v637
    %v904 = vadd.f32 %v903, %v641
    %v905 = vadd.f32 %v904, %v645
    %v906 = vadd.f32 %v905, %v649
    %v907 = vadd.f32 %v906, %v653
    %v908 = vadd.f32 %v907, %v657
    %v909 = vadd.f32 %v908, %v661
    %v910 = vadd.f32 %v909, %v665
    %v911 = vadd.f32 %v910, %v669
    %v912 = vadd.f32 %v354, %v358
    %v913 = vadd.f32 %v912, %v362
    %v914 = vadd.f32 %v913, %v366
    %v915 = vadd.f32 %v914, %v370
    %v916 = vadd.f32 %v915, %v374
    %v917 = vadd.f32 %v916, %v378
    %v918 = vadd.f32 %v917, %v382
    %v919 = vadd.f32 %v918, %v386
    %v920 = vadd.f32 %v919, %v390
    %v921 = vadd.f32 %v920, %v394
    %v922 = vadd.f32 %v921, %v398
    %v923 = vadd.f32 %v922, %v402
    %v924 = vadd.f32 %v923, %v406
    %v925 = vadd.f32 %v924, %v410
    %v926 = vadd.f32 %v925, %v414
    %v927 = vadd.f32 %v926, %v418
    %v928 = vadd.f32 %v927, %v422
    %v929 = vadd.f32 %v928, %v426
    %v930 = vadd.f32 %v929, %v430
    %v931 = vadd.f32 %v930, %v434
    %v932 = vadd.f32 %v931, %v438
    %v933 = vadd.f32 %v932, %v442
    %v934 = vadd.f32 %v933, %v446
    %v935 = vadd.f32 %v934, %v450
    %v936 = vadd.f32 %v935, %v454
    %v937 = vadd.f32 %v936, %v458
    %v938 = vadd.f32 %v937, %v462
    %v939 = vadd.f32 %v938, %v466
    %v940 = vadd.f32 %v939, %v470
    %v941 = vadd.f32 %v940, %v474
    %v942 = vadd.f32 %v941, %v478
    %v943 = vadd.f32 %v942, %v482
    %v944 = vadd.f32 %v943, %v486
    %v945 = vadd.f32 %v944, %v490
    %v946 = vadd.f32 %v945, %v494
    %v947 = vadd.f32 %v946, %v498
    %v948 = vadd.f32 %v947, %v502
    %v949 = vadd.f32 %v948, %v506
    %v950 = vadd.f32 %v949, %v510
    %v951 = vadd.f32 %v950, %v514
    %v952 = vadd.f32 %v951, %v518
    %v953 = vadd.f32 %v952, %v522
    %v954 = vadd.f32 %v953, %v526
    %v955 = vadd.f32 %v954, %v530
    %v956 = vadd.f32 %v955, %v534
    %v957 = vadd.f32 %v956, %v538
    %v958 = vadd.f32 %v957, %v542
    %v959 = vadd.f32 %v958, %v546
    %v960 = vadd.f32 %v959, %v550
    %v961 = vadd.f32 %v960, %v554
    %v962 = vadd.f32 %v961, %v558
    %v963 = vadd.f32 %v962, %v562
    %v964 = vadd.f32 %v963, %v566
    %v965 = vadd.f32 %v964, %v570
    %v966 = vadd.f32 %v965, %v574
    %v967 = vadd.f32 %v966, %v578
    %v968 = vadd.f32 %v967, %v582
    %v969 = vadd.f32 %v968, %v586
    %v970 = vadd.f32 %v969, %v590
    %v971 = vadd.f32 %v970, %v594
    %v972 = vadd.f32 %v971, %v598
    %v973 = vadd.f32 %v972, %v602
    %v974 = vadd.f32 %v973, %v606
    %v975 = vadd.f32 %v974, %v610
    %v976 = vadd.f32 %v975, %v614
    %v977 = vadd.f32 %v976, %v618
    %v978 = vadd.f32 %v977, %v622
    %v979 = vadd.f32 %v978, %v626
    %v980 = vadd.f32 %v979, %v630
    %v981 = vadd.f32 %v980, %v634
    %v982 = vadd.f32 %v981, %v638
    %v983 = vadd.f32 %v982, %v642
    %v984 = vadd.f32 %v983, %v646
    %v985 = vadd.f32 %v984, %v650
    %v986 = vadd.f32 %v985, %v654
    %v987 = vadd.f32 %v986, %v658
    %v988 = vadd.f32 %v987, %v662
    %v989 = vadd.f32 %v988, %v666
    %v990 = vadd.f32 %v989, %v670
    %v991 = vadd.f32 %v671, %v753
    %v992 = vadd.f32 %v672, %v832
    %v993 = vadd.f32 %v673, %v911
    %v994 = vadd.f32 %v674, %v990
    %995 = vst [vmem:[#allocation2] sm:$0xff] %v991
    %996 = vst [vmem:[#allocation2 + $0x8] sm:$0xff] %v992
    %997 = vst [vmem:[#allocation2 + $0x10] sm:$0xff] %v993
    %998 = vst [vmem:[#allocation2 + $0x18] sm:$0xff] %v994
    // Predicated region
    $region14: #{tpu_custom_call.1} parent=1 // pred_check
      %p999 = pneg %p23
    $region15: #{tpu_custom_call.1} parent=1 // pred_check_branch
      %1001 = sbr.rel (%p999) target = $region17
    $region16: #{tpu_custom_call.1} parent=1 // pred_region
      %v1002 = vld [vmem:[#allocation2] sm:$0xff]
      %v1003 = vld [vmem:[#allocation2 + $0x8] sm:$0xff]
      %v1004 = vld [vmem:[#allocation2 + $0x10] sm:$0xff]
      %v1005 = vld [vmem:[#allocation2 + $0x18] sm:$0xff]
      %v1006 = vadd.f32 %v1002, %v1003
      %v1007 = vadd.f32 %v1006, %v1004
      %v1008 = vadd.f32 %v1007, %v1005
      %1009 = vadd.xlane.f32.xlu0 %v1008
      %v1010 = vpop.xlane.xlu0 %1009
      %v1011 = vrot.slane %v1010, 4
      %v1012 = vadd.f32 %v1010, %v1011
      %v1013 = vrot.slane %v1012, 2
      %v1014 = vadd.f32 %v1012, %v1013
      %v1015 = vrot.slane %v1014, 1
      %v1016 = vadd.f32 %v1014, %v1015
      %s1017 = vtos %v1016
      %v1018 = vstv %s1017
      %vm1019 = vcmask 0
      %1020 = vst.msk [vmem:[#allocation6] sm:$0x1] %vm1019, %v1018
    $region17: #{tpu_custom_call.1} parent=1 // pred_fallthru
      _
    // Predicated region
    $region18: #{tpu_custom_call.1} parent=1 // pred_check
      _
    $region19: #{tpu_custom_call.1} parent=1 // pred_check_branch
      %1022 = sbr.rel (0) target = $region21
    $region20: #{tpu_custom_call.1} parent=1 // pred_region
      %s1024 = ssub.s32 16, 16
      %1025 = vsyncadd [#allocation5], %s1024
      %s1027 = sshll.u32 [#allocation6], 4
      %s1028 = int_to_ptr.vmem [resolvable:$true] %s1027
      %1030 = dma.vmem_to_hbm [thread:$0]  %s1028, 16, %s1, [#allocation5]
    $region21: #{tpu_custom_call.1} parent=1 // pred_fallthru
      _
    // Predicated region
    $region22: #{tpu_custom_call.1} parent=1 // pred_check
      _
    $region23: #{tpu_custom_call.1} parent=1 // pred_check_branch
      %1032 = sbr.rel (0) target = $region25
    $region24: #{tpu_custom_call.1} parent=1 // pred_region
      %1033 = dma.done [#allocation5], 16
    $region25: #{tpu_custom_call.1} parent=1 // pred_fallthru
      _
    %1034 = vsyncpa [#allocation4], 1
    %1035 = vsyncpa [#allocation5], 1

</llo_original>
